<compile_context>
chip_gen: v7x
topology: tpu7x:2x2x1
jax: 0.10.0
libtpu: 0.0.40
codegen_flags: <defaults>
</compile_context>

<pallas_src>
import functools
import math

import jax
import jax.numpy as jnp
from jax.experimental import pallas as pl
from jax.experimental.pallas import tpu as pltpu


def _lora_kernel(x_ref, wa_ref, wbt_ref, q_ref, k_ref, v_ref,
                 qo_ref, ko_ref, vo_ref, *, num_heads, head_dim, dim):
    # x block: (1, tn, C); wa: (r, C) full; wbt: (r, 3C) full;
    # q/k/v blocks: (1, H, tn, hd).
    x = x_ref[0]                                                  # (tn, C)
    tn = x.shape[0]

    # lora_a: contract C against wa's dim 1 (wa stays in its native,
    # lane-dense (r, C) layout; no transpose materialized in VMEM).
    h = jax.lax.dot_general(
        x, wa_ref[...], (((1,), (1,)), ((), ())),
        preferred_element_type=jnp.float32)                       # (tn, r)
    h = h.astype(x.dtype)

    # lora_b: weight pre-transposed in the wrapper to (r, 3C), lane-dense.
    delta = jnp.dot(h, wbt_ref[...],
                    preferred_element_type=jnp.float32)           # (tn, 3C)

    def head_major(slab):                                         # (tn, C)
        # -> (H, tn, hd): one reshape + one transpose, no per-head loop.
        return jnp.transpose(slab.reshape(tn, num_heads, head_dim), (1, 0, 2))

    dq = head_major(delta[:, 0 * dim:1 * dim])
    dk = head_major(delta[:, 1 * dim:2 * dim])
    dv = head_major(delta[:, 2 * dim:3 * dim])

    # Residual add in fp32, cast only at the single whole-block store.
    qo_ref[0] = (q_ref[0] + dq).astype(qo_ref.dtype)
    ko_ref[0] = (k_ref[0] + dk).astype(ko_ref.dtype)
    vo_ref[0] = (v_ref[0] + dv).astype(vo_ref.dtype)


def _default_token_tile(N, C, itemsize):
    """Largest token tile whose ~2x-buffered working set fits comfortably
    inside the smallest-generation (v7x) VMEM budget."""
    budget = 48 * 1024 * 1024          # leave headroom under 64 MiB physical
    per_row = 2 * 7 * C * itemsize     # 2 bufs x (x + 3 qkv-in + 3 qkv-out)
    cap = max(8, budget // max(per_row, 1))
    if N <= cap:
        return N
    for t in range(min(N, cap), 7, -1):       # prefer multiples of 8
        if N % t == 0 and t % 8 == 0:
            return t
    for t in range(min(N, cap), 0, -1):
        if N % t == 0:
            return t
    return N


def lora_forward(x, wa, wb, q, k, v, *, num_heads, token_tile=None):
    """Pallas implementation of LoRA.forward (eval mode).

    x:  (B, N, C)
    wa: (r, C)       -- lora_a.weight
    wb: (3C, r)      -- lora_b.weight
    q, k, v: (B, H, N, C // H)
    returns (q_out, k_out, v_out) with same shape/dtype as q, k, v.
    """
    B, N, C = x.shape
    r = wa.shape[0]
    assert wa.shape == (r, C)
    assert wb.shape == (3 * C, r)
    assert C % num_heads == 0
    head_dim = C // num_heads
    qkv_shape = (B, num_heads, N, head_dim)
    assert q.shape == qkv_shape, (q.shape, qkv_shape)
    assert k.shape == qkv_shape and v.shape == qkv_shape
    assert k.dtype == q.dtype and v.dtype == q.dtype

    tn = token_tile or _default_token_tile(N, C, jnp.dtype(x.dtype).itemsize)
    assert N % tn == 0, (N, tn)

    # One-time tiny HBM relayout: (3C, r) -> (r, 3C) so the second matmul is a
    # plain `h @ wbt` with 3C on the lane axis (lane-dense weight DMA/VMEM).
    wbt = wb.T

    kernel = functools.partial(
        _lora_kernel, num_heads=num_heads, head_dim=head_dim, dim=C)

    qkv_spec = pl.BlockSpec((1, num_heads, tn, head_dim),
                            lambda b, t: (b, 0, t, 0))

    grid_spec = pltpu.PrefetchScalarGridSpec(
        num_scalar_prefetch=0,
        grid=(B, N // tn),
        in_specs=[
            pl.BlockSpec((1, tn, C), lambda b, t: (b, t, 0)),   # x
            pl.BlockSpec((r, C), lambda b, t: (0, 0)),          # wa (resident)
            pl.BlockSpec((r, 3 * C), lambda b, t: (0, 0)),      # wb.T (resident)
            qkv_spec,                                           # q
            qkv_spec,                                           # k
            qkv_spec,                                           # v
        ],
        out_specs=[qkv_spec, qkv_spec, qkv_spec],
    )

    out_shape = [
        jax.ShapeDtypeStruct(q.shape, q.dtype),
        jax.ShapeDtypeStruct(k.shape, k.dtype),
        jax.ShapeDtypeStruct(v.shape, v.dtype),
    ]

    return pl.pallas_call(
        kernel,
        grid_spec=grid_spec,
        out_shape=out_shape,
        # q/k/v are pure read-modify-write: alias them to the outputs.
        input_output_aliases={3: 0, 4: 1, 5: 2},
        compiler_params=pltpu.CompilerParams(
            dimension_semantics=("parallel", "parallel"),
            vmem_limit_bytes=64 * 1024 * 1024),
    )(x, wa, wbt, q, k, v)


def lora_forward_ref(x, wa, wb, q, k, v, *, num_heads):
    """Pure-JAX reference mirroring the PyTorch forward (eval mode)."""
    B, N, C = x.shape
    delta = (x @ wa.T) @ wb.T                                   # (B, N, 3C)
    delta = delta.reshape(B, N, 3, num_heads, C // num_heads)
    delta = jnp.transpose(delta, (2, 0, 3, 1, 4))               # (3, B, H, N, hd)
    return q + delta[0], k + delta[1], v + delta[2]


if __name__ == "__main__":
    # Small shapes consistent with the module's forward.
    B, N, C = 2, 8, 32
    num_heads = 4
    head_dim = C // num_heads
    bottleneck = 4  # peft_config.lora_bottleneck

    key = jax.random.PRNGKey(0)
    kx, kq, kk, kv, ka, kb = jax.random.split(key, 6)

    x = jax.random.normal(kx, (B, N, C), dtype=jnp.float32)
    q = jax.random.normal(kq, (B, num_heads, N, head_dim), dtype=jnp.float32)
    k = jax.random.normal(kk, (B, num_heads, N, head_dim), dtype=jnp.float32)
    v = jax.random.normal(kv, (B, num_heads, N, head_dim), dtype=jnp.float32)

    # Parameter init per the module's __init__:
    #   lora_a: kaiming_uniform_(a=sqrt(5)) -> U(-1/sqrt(fan_in), 1/sqrt(fan_in))
    #   lora_b: zeros
    bound = 1.0 / math.sqrt(C)
    wa = jax.random.uniform(ka, (bottleneck, C), minval=-bound, maxval=bound,
                            dtype=jnp.float32)
    wb = jnp.zeros((3 * C, bottleneck), dtype=jnp.float32)
    wb_nz = jax.random.uniform(kb, (3 * C, bottleneck), minval=-0.1, maxval=0.1,
                               dtype=jnp.float32)

    # References first (pure JAX), so in-place aliasing of q/k/v can never
    # perturb the comparison baselines.
    qr, kr, vr = lora_forward_ref(x, wa, wb, q, k, v, num_heads=num_heads)
    qr2, kr2, vr2 = lora_forward_ref(x, wa, wb_nz, q, k, v, num_heads=num_heads)
    jax.block_until_ready((qr, kr, vr, qr2, kr2, vr2))

    # Case 1: module's own init (zero lora_b) -> delta == 0.
    qo, ko, vo = lora_forward(x, wa, wb, q, k, v, num_heads=num_heads)
    jax.block_until_ready((qo, ko, vo))
    assert jnp.allclose(qo, qr, atol=1e-5), "q mismatch"
    assert jnp.allclose(ko, kr, atol=1e-5), "k mismatch"
    assert jnp.allclose(vo, vr, atol=1e-5), "v mismatch"

    # Case 2: non-zero lora_b (exercises matmuls + head split + residual add).
    qo2, ko2, vo2 = lora_forward(x, wa, wb_nz, q, k, v, num_heads=num_heads)
    jax.block_until_ready((qo2, ko2, vo2))
    assert jnp.allclose(qo2, qr2, atol=1e-5), "q mismatch (nonzero wb)"
    assert jnp.allclose(ko2, kr2, atol=1e-5), "k mismatch (nonzero wb)"
    assert jnp.allclose(vo2, vr2, atol=1e-5), "v mismatch (nonzero wb)"

    print("KERNEL_OK")
</pallas_src>

<mosaic_0001>
module attributes {stable_mosaic.version = 11 : i64} {
  func.func @_lora_kernel(%arg0: i32, %arg1: i32, %arg2: memref<1x8x32xf32, #tpu.memory_space<vmem>>, %arg3: memref<4x32xf32, #tpu.memory_space<vmem>>, %arg4: memref<4x96xf32, #tpu.memory_space<vmem>>, %arg5: memref<1x4x8x8xf32, #tpu.memory_space<vmem>>, %arg6: memref<1x4x8x8xf32, #tpu.memory_space<vmem>>, %arg7: memref<1x4x8x8xf32, #tpu.memory_space<vmem>>, %arg8: memref<1x4x8x8xf32, #tpu.memory_space<vmem>>, %arg9: memref<1x4x8x8xf32, #tpu.memory_space<vmem>>, %arg10: memref<1x4x8x8xf32, #tpu.memory_space<vmem>>) attributes {dimension_semantics = [#tpu.dimension_semantics<parallel>, #tpu.dimension_semantics<parallel>], iteration_bounds = array<i64: 2, 1>, scalar_prefetch = 0 : i64, scratch_operands = 0 : i64, tpu.core_type = #tpu.core_type<tc>, window_params = [{transform_indices = @transform_0, window_bounds = array<i64: 1, 8, 32>}, {pipeline_mode = #tpu.pipeline_mode<synchronous>, transform_indices = @transform_1, window_bounds = array<i64: 4, 32>}, {pipeline_mode = #tpu.pipeline_mode<synchronous>, transform_indices = @transform_2, window_bounds = array<i64: 4, 96>}, {transform_indices = @transform_3, window_bounds = array<i64: 1, 4, 8, 8>}, {transform_indices = @transform_4, window_bounds = array<i64: 1, 4, 8, 8>}, {transform_indices = @transform_5, window_bounds = array<i64: 1, 4, 8, 8>}, {transform_indices = @transform_6, window_bounds = array<i64: 1, 4, 8, 8>}, {transform_indices = @transform_7, window_bounds = array<i64: 1, 4, 8, 8>}, {transform_indices = @transform_8, window_bounds = array<i64: 1, 4, 8, 8>}]} {
    %c0 = arith.constant 0 : index
    %c0_0 = arith.constant 0 : index
    %c0_1 = arith.constant 0 : index
    %0 = vector.load %arg2[%c0, %c0_0, %c0_1] : memref<1x8x32xf32, #tpu.memory_space<vmem>>, vector<1x8x32xf32>
    %1 = vector.shape_cast %0 : vector<1x8x32xf32> to vector<8x32xf32>
    %c0_2 = arith.constant 0 : index
    %c0_3 = arith.constant 0 : index
    %2 = vector.load %arg3[%c0_2, %c0_3] : memref<4x32xf32, #tpu.memory_space<vmem>>, vector<4x32xf32>
    %cst = arith.constant dense<0.000000e+00> : vector<8x4xf32>
    %3 = tpu.matmul %1, %2, %cst {dimension_numbers = #tpu.dot_dimension_numbers<[1], [1], [0], [0], [0, 0, 1, 0], [], []>} : vector<8x32xf32>, vector<4x32xf32>, vector<8x4xf32> -> vector<8x4xf32>
    %c0_4 = arith.constant 0 : index
    %c0_5 = arith.constant 0 : index
    %4 = vector.load %arg4[%c0_4, %c0_5] : memref<4x96xf32, #tpu.memory_space<vmem>>, vector<4x96xf32>
    %cst_6 = arith.constant dense<0.000000e+00> : vector<8x96xf32>
    %5 = tpu.matmul %3, %4, %cst_6 {dimension_numbers = #tpu.dot_dimension_numbers<[1], [0], [0], [1], [0, 0, 1, 1], [], []>} : vector<8x4xf32>, vector<4x96xf32>, vector<8x96xf32> -> vector<8x96xf32>
    %6 = vector.extract_strided_slice %5 {offsets = [0, 0], sizes = [8, 32], strides = [1, 1]} : vector<8x96xf32> to vector<8x32xf32>
    %7 = vector.shape_cast %6 : vector<8x32xf32> to vector<8x4x8xf32>
    %8 = tpu.transpose %7, [1, 0, 2] : vector<8x4x8xf32> -> vector<4x8x8xf32>
    %9 = vector.extract_strided_slice %5 {offsets = [0, 32], sizes = [8, 32], strides = [1, 1]} : vector<8x96xf32> to vector<8x32xf32>
    %10 = vector.shape_cast %9 : vector<8x32xf32> to vector<8x4x8xf32>
    %11 = tpu.transpose %10, [1, 0, 2] : vector<8x4x8xf32> -> vector<4x8x8xf32>
    %12 = vector.extract_strided_slice %5 {offsets = [0, 64], sizes = [8, 32], strides = [1, 1]} : vector<8x96xf32> to vector<8x32xf32>
    %13 = vector.shape_cast %12 : vector<8x32xf32> to vector<8x4x8xf32>
    %14 = tpu.transpose %13, [1, 0, 2] : vector<8x4x8xf32> -> vector<4x8x8xf32>
    %c0_7 = arith.constant 0 : index
    %c0_8 = arith.constant 0 : index
    %c0_9 = arith.constant 0 : index
    %c0_10 = arith.constant 0 : index
    %15 = vector.load %arg5[%c0_7, %c0_8, %c0_9, %c0_10] : memref<1x4x8x8xf32, #tpu.memory_space<vmem>>, vector<1x4x8x8xf32>
    %16 = vector.shape_cast %15 : vector<1x4x8x8xf32> to vector<4x8x8xf32>
    %17 = arith.addf %16, %8 : vector<4x8x8xf32>
    %c0_11 = arith.constant 0 : index
    %c0_12 = arith.constant 0 : index
    %c0_13 = arith.constant 0 : index
    %c0_14 = arith.constant 0 : index
    %18 = vector.load %arg8[%c0_11, %c0_12, %c0_13, %c0_14] : memref<1x4x8x8xf32, #tpu.memory_space<vmem>>, vector<1x4x8x8xf32>
    %19 = vector.shape_cast %18 : vector<1x4x8x8xf32> to vector<4x8x8xf32>
    %20 = vector.shape_cast %17 : vector<4x8x8xf32> to vector<1x4x8x8xf32>
    tpu.vector_store %arg8[%c0_11, %c0_12, %c0_13, %c0_14], %20 {strides = array<i32>} : memref<1x4x8x8xf32, #tpu.memory_space<vmem>>, vector<1x4x8x8xf32>,
    %c0_15 = arith.constant 0 : index
    %c0_16 = arith.constant 0 : index
    %c0_17 = arith.constant 0 : index
    %c0_18 = arith.constant 0 : index
    %21 = vector.load %arg6[%c0_15, %c0_16, %c0_17, %c0_18] : memref<1x4x8x8xf32, #tpu.memory_space<vmem>>, vector<1x4x8x8xf32>
    %22 = vector.shape_cast %21 : vector<1x4x8x8xf32> to vector<4x8x8xf32>
    %23 = arith.addf %22, %11 : vector<4x8x8xf32>
    %c0_19 = arith.constant 0 : index
    %c0_20 = arith.constant 0 : index
    %c0_21 = arith.constant 0 : index
    %c0_22 = arith.constant 0 : index
    %24 = vector.load %arg9[%c0_19, %c0_20, %c0_21, %c0_22] : memref<1x4x8x8xf32, #tpu.memory_space<vmem>>, vector<1x4x8x8xf32>
    %25 = vector.shape_cast %24 : vector<1x4x8x8xf32> to vector<4x8x8xf32>
    %26 = vector.shape_cast %23 : vector<4x8x8xf32> to vector<1x4x8x8xf32>
    tpu.vector_store %arg9[%c0_19, %c0_20, %c0_21, %c0_22], %26 {strides = array<i32>} : memref<1x4x8x8xf32, #tpu.memory_space<vmem>>, vector<1x4x8x8xf32>,
    %c0_23 = arith.constant 0 : index
    %c0_24 = arith.constant 0 : index
    %c0_25 = arith.constant 0 : index
    %c0_26 = arith.constant 0 : index
    %27 = vector.load %arg7[%c0_23, %c0_24, %c0_25, %c0_26] : memref<1x4x8x8xf32, #tpu.memory_space<vmem>>, vector<1x4x8x8xf32>
    %28 = vector.shape_cast %27 : vector<1x4x8x8xf32> to vector<4x8x8xf32>
    %29 = arith.addf %28, %14 : vector<4x8x8xf32>
    %c0_27 = arith.constant 0 : index
    %c0_28 = arith.constant 0 : index
    %c0_29 = arith.constant 0 : index
    %c0_30 = arith.constant 0 : index
    %30 = vector.load %arg10[%c0_27, %c0_28, %c0_29, %c0_30] : memref<1x4x8x8xf32, #tpu.memory_space<vmem>>, vector<1x4x8x8xf32>
    %31 = vector.shape_cast %30 : vector<1x4x8x8xf32> to vector<4x8x8xf32>
    %32 = vector.shape_cast %29 : vector<4x8x8xf32> to vector<1x4x8x8xf32>
    tpu.vector_store %arg10[%c0_27, %c0_28, %c0_29, %c0_30], %32 {strides = array<i32>} : memref<1x4x8x8xf32, #tpu.memory_space<vmem>>, vector<1x4x8x8xf32>,
    return
  }
  func.func @transform_0(%arg0: i32, %arg1: i32) -> (i32, i32, i32) {
    %c0_i32 = arith.constant 0 : i32
    %c0_i32_0 = arith.constant 0 : i32
    return %arg0, %arg1, %c0_i32 : i32, i32, i32
  }
  func.func @transform_1(%arg0: i32, %arg1: i32) -> (i32, i32) {
    %c0_i32 = arith.constant 0 : i32
    %c0_i32_0 = arith.constant 0 : i32
    %c0_i32_1 = arith.constant 0 : i32
    return %c0_i32, %c0_i32_0 : i32, i32
  }
  func.func @transform_2(%arg0: i32, %arg1: i32) -> (i32, i32) {
    %c0_i32 = arith.constant 0 : i32
    %c0_i32_0 = arith.constant 0 : i32
    %c0_i32_1 = arith.constant 0 : i32
    return %c0_i32, %c0_i32_0 : i32, i32
  }
  func.func @transform_3(%arg0: i32, %arg1: i32) -> (i32, i32, i32, i32) {
    %c0_i32 = arith.constant 0 : i32
    %c0_i32_0 = arith.constant 0 : i32
    %c0_i32_1 = arith.constant 0 : i32
    return %arg0, %c0_i32, %arg1, %c0_i32_0 : i32, i32, i32, i32
  }
  func.func @transform_4(%arg0: i32, %arg1: i32) -> (i32, i32, i32, i32) {
    %c0_i32 = arith.constant 0 : i32
    %c0_i32_0 = arith.constant 0 : i32
    %c0_i32_1 = arith.constant 0 : i32
    return %arg0, %c0_i32, %arg1, %c0_i32_0 : i32, i32, i32, i32
  }
  func.func @transform_5(%arg0: i32, %arg1: i32) -> (i32, i32, i32, i32) {
    %c0_i32 = arith.constant 0 : i32
    %c0_i32_0 = arith.constant 0 : i32
    %c0_i32_1 = arith.constant 0 : i32
    return %arg0, %c0_i32, %arg1, %c0_i32_0 : i32, i32, i32, i32
  }
  func.func @transform_6(%arg0: i32, %arg1: i32) -> (i32, i32, i32, i32) {
    %c0_i32 = arith.constant 0 : i32
    %c0_i32_0 = arith.constant 0 : i32
    %c0_i32_1 = arith.constant 0 : i32
    return %arg0, %c0_i32, %arg1, %c0_i32_0 : i32, i32, i32, i32
  }
  func.func @transform_7(%arg0: i32, %arg1: i32) -> (i32, i32, i32, i32) {
    %c0_i32 = arith.constant 0 : i32
    %c0_i32_0 = arith.constant 0 : i32
    %c0_i32_1 = arith.constant 0 : i32
    return %arg0, %c0_i32, %arg1, %c0_i32_0 : i32, i32, i32, i32
  }
  func.func @transform_8(%arg0: i32, %arg1: i32) -> (i32, i32, i32, i32) {
    %c0_i32 = arith.constant 0 : i32
    %c0_i32_0 = arith.constant 0 : i32
    %c0_i32_1 = arith.constant 0 : i32
    return %arg0, %c0_i32, %arg1, %c0_i32_0 : i32, i32, i32, i32
  }
}

</mosaic_0001>

<llo_original>
// kernel: tpu_custom_call.1
$region0: #{tpu_custom_call.1}
  #allocation0 [shape = 'u32[]', space=smem, size = 0x4, offset = 0x4, fixed_abs, tag = 'smem constant byte address 0x4 - core index']
  #allocation1 [shape = 'u32[144,128]{1,0:T(1,128)}', space=vmem, size = 0x12000, scoped, tag = 'internal scratch']
  %s0 = inlined_call_operand.hbm [shape: f32[2,8,32], index: 0, kind: input, shape index: {}]
  %s1 = inlined_call_operand.hbm [shape: f32[4,32], index: 1, kind: input, shape index: {}]
  %s2 = inlined_call_operand.hbm [shape: f32[4,96], index: 2, kind: input, shape index: {}]
  %s3 = inlined_call_operand.hbm [shape: f32[2,4,8,8], index: 3, kind: input, shape index: {}, may-alias: {3,6}]
  %s4 = inlined_call_operand.hbm [shape: f32[2,4,8,8], index: 4, kind: input, shape index: {}, may-alias: {4,7}]
  %s5 = inlined_call_operand.hbm [shape: f32[2,4,8,8], index: 5, kind: input, shape index: {}, may-alias: {5,8}]
  %s6 = inlined_call_operand.hbm [shape: f32[2,4,8,8], index: 6, kind: output, shape index: {0}, may-alias: {3,6}]
  %s7 = inlined_call_operand.hbm [shape: f32[2,4,8,8], index: 7, kind: output, shape index: {1}, may-alias: {4,7}]
  %s8 = inlined_call_operand.hbm [shape: f32[2,4,8,8], index: 8, kind: output, shape index: {2}, may-alias: {5,8}]
  %9 = xla_tuple %s6, %s7, %s8
  %s10 = sld [smem:[#allocation0]]
  $region97: #{tpu_custom_call.1} parent=0
    _
  %s12 = ssub.s32 1, %s10
  %s13 = scalar_select 0, %s12, %s10
  $region1: #{tpu_custom_call.1} parent=0
    #allocation2 [shape = 'u8[8192]{0}', space=vmem, size = 0x2000, scoped, tag = 'input window, operand 0']
    #allocation3 [shape = 's32[2]{0}', space=sflag, size = 0x8, scoped, tag = 'scoped memory for tpu_custom_call.1']
    #allocation4 [shape = 's32[2]{0}', space=sflag, size = 0x8, scoped, tag = 'scoped memory for tpu_custom_call.1']
    #allocation5 [shape = 'u8[2048]{0}', space=vmem, size = 0x800, scoped, tag = 'input window, operand 1, single buffered']
    #allocation6 [shape = 's32[1]{0}', space=sflag, size = 0x4, scoped, tag = 'scoped memory for tpu_custom_call.1']
    #allocation7 [shape = 'u8[2048]{0}', space=vmem, size = 0x800, scoped, tag = 'input window, operand 2, single buffered']
    #allocation8 [shape = 'u8[32768]{0}', space=vmem, size = 0x8000, scoped, tag = 'input window, operand 3']
    #allocation9 [shape = 's32[2]{0}', space=sflag, size = 0x8, scoped, tag = 'scoped memory for tpu_custom_call.1']
    #allocation10 [shape = 'u8[32768]{0}', space=vmem, size = 0x8000, scoped, tag = 'input window, operand 4']
    #allocation11 [shape = 'u8[32768]{0}', space=vmem, size = 0x8000, scoped, tag = 'input window, operand 5']
    #allocation12 [shape = 's32[2]{0}', space=sflag, size = 0x8, scoped, tag = 'scoped memory for tpu_custom_call.1']
    #allocation13 [shape = 'u8[32768]{0}', space=vmem, size = 0x8000, scoped, tag = 'output window, operand 0']
    #allocation14 [shape = 'u8[32768]{0}', space=vmem, size = 0x8000, scoped, tag = 'output window, operand 1']
    #allocation15 [shape = 's32[2]{0}', space=sflag, size = 0x8, scoped, tag = 'scoped memory for tpu_custom_call.1']
    #allocation16 [shape = 'u8[32768]{0}', space=vmem, size = 0x8000, scoped, tag = 'output window, operand 2']
    %14 = vsyncpa [#allocation3], 0
    %s15 = scalar_lea.sflag [#allocation3], 1
    %16 = vsyncpa %s15, 0
    %17 = vsyncpa [#allocation6], 0
    %18 = vsyncpa [#allocation9], 0
    %s19 = scalar_lea.sflag [#allocation9], 1
    %20 = vsyncpa %s19, 0
    %21 = vsyncpa [#allocation12], 0
    %s22 = scalar_lea.sflag [#allocation12], 1
    %23 = vsyncpa %s22, 0
    %24 = vsyncpa [#allocation4], 0
    %s25 = scalar_lea.sflag [#allocation4], 1
    %26 = vsyncpa %s25, 0
    %27 = vsyncpa [#allocation15], 0
    %s28 = scalar_lea.sflag [#allocation15], 1
    %29 = vsyncpa %s28, 0
    loop: start=0, step=1, limit=4
    $region2: #{tpu_custom_call.1} parent=1 // loop_pre_header
      _
    $region3: #{tpu_custom_call.1} parent=1 // loop_header
      %s31 = sphi 0, %s35
      %p32 = scmp.ge.s32.totalorder %s31, 4
      %s38 = sphi 0, %s50
      %s39 = sphi 0, %s46
      %s40 = sphi 0, %s38
      %s41 = sphi 0, %s39
      %s42 = sphi 0, %s40
      %s43 = sphi 0, %s41
      %s55 = sphi 0, %s57
      %s58 = sphi 0, %s55
      %s59 = sphi 0, %s58
      %s75 = sphi 0, %s59
      %s79 = sphi 0, %s79
      %s81 = sphi 0, %s79
      %s82 = sphi 0, %s81
      %s96 = sphi 0, %s82
      %s100 = sphi 0, %s100
      %s102 = sphi 0, %s100
      %s103 = sphi 0, %s102
      %s117 = sphi 0, %s103
      %s125 = sphi 0, %s127
      %s128 = sphi 0, %s125
      %s129 = sphi 0, %s128
      %s145 = sphi 0, %s129
      %s153 = sphi 0, %s155
      %s156 = sphi 0, %s153
      %s157 = sphi 0, %s156
      %s173 = sphi 0, %s157
      %s181 = sphi 0, %s183
      %s184 = sphi 0, %s181
      %s185 = sphi 0, %s184
      %s201 = sphi 0, %s185
      %s209 = sphi 0, %s211
      %s212 = sphi 0, %s209
      %s213 = sphi 0, %s212
      %s229 = sphi 0, %s213
      %s237 = sphi 0, %s239
      %s240 = sphi 0, %s237
      %s241 = sphi 0, %s240
      %s257 = sphi 0, %s241
      %s265 = sphi 0, %s267
      %s268 = sphi 0, %s265
      %s269 = sphi 0, %s268
      %s285 = sphi 0, %s269
    $region4: #{tpu_custom_call.1} parent=1 // loop_header_branch
      %34 = sbr.rel (%p32) target = $region8
    $region5: #{tpu_custom_call.1} parent=1 // loop_body
      %s36 = ssub.s32 %s31, 1
      %s37 = ssub.s32 %s31, 2
      %s44 = sadd.s32 1, %s39
      %p45 = scmp.ge.s32.totalorder %s44, 1
      %s46 = scalar_select %p45, 0, %s44
      %s47 = sadd.s32 1, %s38
      %s48 = scalar_select %p45, %s47, %s38
      %p49 = scmp.ge.s32.totalorder %s48, 2
      %s50 = scalar_select %p49, 0, %s48
      %s51 = ssub.s32 %s38, %s50
      %s52 = ssub.s32 %s39, %s46
      %s53 = sor.u32 %s51, %s52
      %p54 = scmp.eq.s32.totalorder %s53, 0
      %s56 = sadd.s32 %s55, 1
      %s57 = scalar_select %p54, %s55, %s56
      %p60 = pneg %p54
      %p61 = scmp.eq.s32.totalorder %s31, 1
      %p62 = por %p60, %p61
      %p63 = scmp.ne.s32.totalorder %s55, %s58
      %p64 = scmp.eq.s32.totalorder %s31, 0
      %p65 = por %p63, %p64
      %p66 = scmp.ne.s32.totalorder %s55, %s58
      %p67 = scmp.eq.s32.totalorder %s36, 1
      %p68 = por %p66, %p67
      %p69 = scmp.ne.s32.totalorder %s58, %s59
      %p70 = scmp.eq.s32.totalorder %s36, 0
      %p71 = por %p69, %p70
      %p72 = scmp.ne.s32.totalorder %s58, %s59
      %p73 = scmp.eq.s32.totalorder %s37, 1
      %p74 = por %p72, %p73
      %p76 = scmp.ne.s32.totalorder %s59, %s75
      %p77 = scmp.eq.s32.totalorder %s37, 0
      %p78 = por %p76, %p77
      %s80 = sadd.s32 %s79, 1
      %p83 = scmp.eq.s32.totalorder %s31, 1
      %p84 = scmp.ne.s32.totalorder %s79, %s81
      %p85 = scmp.eq.s32.totalorder %s31, 0
      %p86 = por %p84, %p85
      %p87 = scmp.ne.s32.totalorder %s79, %s81
      %p88 = scmp.eq.s32.totalorder %s36, 1
      %p89 = por %p87, %p88
      %p90 = scmp.ne.s32.totalorder %s81, %s82
      %p91 = scmp.eq.s32.totalorder %s36, 0
      %p92 = por %p90, %p91
      %p93 = scmp.ne.s32.totalorder %s81, %s82
      %p94 = scmp.eq.s32.totalorder %s37, 1
      %p95 = por %p93, %p94
      %p97 = scmp.ne.s32.totalorder %s82, %s96
      %p98 = scmp.eq.s32.totalorder %s37, 0
      %p99 = por %p97, %p98
      %s101 = sadd.s32 %s100, 1
      %p104 = scmp.eq.s32.totalorder %s31, 1
      %p105 = scmp.ne.s32.totalorder %s100, %s102
      %p106 = scmp.eq.s32.totalorder %s31, 0
      %p107 = por %p105, %p106
      %p108 = scmp.ne.s32.totalorder %s100, %s102
      %p109 = scmp.eq.s32.totalorder %s36, 1
      %p110 = por %p108, %p109
      %p111 = scmp.ne.s32.totalorder %s102, %s103
      %p112 = scmp.eq.s32.totalorder %s36, 0
      %p113 = por %p111, %p112
      %p114 = scmp.ne.s32.totalorder %s102, %s103
      %p115 = scmp.eq.s32.totalorder %s37, 1
      %p116 = por %p114, %p115
      %p118 = scmp.ne.s32.totalorder %s103, %s117
      %p119 = scmp.eq.s32.totalorder %s37, 0
      %p120 = por %p118, %p119
      %s121 = ssub.s32 %s38, %s50
      %s122 = ssub.s32 %s39, %s46
      %s123 = sor.u32 %s121, %s122
      %p124 = scmp.eq.s32.totalorder %s123, 0
      %s126 = sadd.s32 %s125, 1
      %s127 = scalar_select %p124, %s125, %s126
      %p130 = pneg %p124
      %p131 = scmp.eq.s32.totalorder %s31, 1
      %p132 = por %p130, %p131
      %p133 = scmp.ne.s32.totalorder %s125, %s128
      %p134 = scmp.eq.s32.totalorder %s31, 0
      %p135 = por %p133, %p134
      %p136 = scmp.ne.s32.totalorder %s125, %s128
      %p137 = scmp.eq.s32.totalorder %s36, 1
      %p138 = por %p136, %p137
      %p139 = scmp.ne.s32.totalorder %s128, %s129
      %p140 = scmp.eq.s32.totalorder %s36, 0
      %p141 = por %p139, %p140
      %p142 = scmp.ne.s32.totalorder %s128, %s129
      %p143 = scmp.eq.s32.totalorder %s37, 1
      %p144 = por %p142, %p143
      %p146 = scmp.ne.s32.totalorder %s129, %s145
      %p147 = scmp.eq.s32.totalorder %s37, 0
      %p148 = por %p146, %p147
      %s149 = ssub.s32 %s38, %s50
      %s150 = ssub.s32 %s39, %s46
      %s151 = sor.u32 %s149, %s150
      %p152 = scmp.eq.s32.totalorder %s151, 0
      %s154 = sadd.s32 %s153, 1
      %s155 = scalar_select %p152, %s153, %s154
      %p158 = pneg %p152
      %p159 = scmp.eq.s32.totalorder %s31, 1
      %p160 = por %p158, %p159
      %p161 = scmp.ne.s32.totalorder %s153, %s156
      %p162 = scmp.eq.s32.totalorder %s31, 0
      %p163 = por %p161, %p162
      %p164 = scmp.ne.s32.totalorder %s153, %s156
      %p165 = scmp.eq.s32.totalorder %s36, 1
      %p166 = por %p164, %p165
      %p167 = scmp.ne.s32.totalorder %s156, %s157
      %p168 = scmp.eq.s32.totalorder %s36, 0
      %p169 = por %p167, %p168
      %p170 = scmp.ne.s32.totalorder %s156, %s157
      %p171 = scmp.eq.s32.totalorder %s37, 1
      %p172 = por %p170, %p171
      %p174 = scmp.ne.s32.totalorder %s157, %s173
      %p175 = scmp.eq.s32.totalorder %s37, 0
      %p176 = por %p174, %p175
      %s177 = ssub.s32 %s38, %s50
      %s178 = ssub.s32 %s39, %s46
      %s179 = sor.u32 %s177, %s178
      %p180 = scmp.eq.s32.totalorder %s179, 0
      %s182 = sadd.s32 %s181, 1
      %s183 = scalar_select %p180, %s181, %s182
      %p186 = pneg %p180
      %p187 = scmp.eq.s32.totalorder %s31, 1
      %p188 = por %p186, %p187
      %p189 = scmp.ne.s32.totalorder %s181, %s184
      %p190 = scmp.eq.s32.totalorder %s31, 0
      %p191 = por %p189, %p190
      %p192 = scmp.ne.s32.totalorder %s181, %s184
      %p193 = scmp.eq.s32.totalorder %s36, 1
      %p194 = por %p192, %p193
      %p195 = scmp.ne.s32.totalorder %s184, %s185
      %p196 = scmp.eq.s32.totalorder %s36, 0
      %p197 = por %p195, %p196
      %p198 = scmp.ne.s32.totalorder %s184, %s185
      %p199 = scmp.eq.s32.totalorder %s37, 1
      %p200 = por %p198, %p199
      %p202 = scmp.ne.s32.totalorder %s185, %s201
      %p203 = scmp.eq.s32.totalorder %s37, 0
      %p204 = por %p202, %p203
      %s205 = ssub.s32 %s38, %s50
      %s206 = ssub.s32 %s39, %s46
      %s207 = sor.u32 %s205, %s206
      %p208 = scmp.eq.s32.totalorder %s207, 0
      %s210 = sadd.s32 %s209, 1
      %s211 = scalar_select %p208, %s209, %s210
      %p214 = pneg %p208
      %p215 = scmp.eq.s32.totalorder %s31, 1
      %p216 = por %p214, %p215
      %p217 = scmp.ne.s32.totalorder %s209, %s212
      %p218 = scmp.eq.s32.totalorder %s31, 0
      %p219 = por %p217, %p218
      %p220 = scmp.ne.s32.totalorder %s209, %s212
      %p221 = scmp.eq.s32.totalorder %s36, 1
      %p222 = por %p220, %p221
      %p223 = scmp.ne.s32.totalorder %s212, %s213
      %p224 = scmp.eq.s32.totalorder %s36, 0
      %p225 = por %p223, %p224
      %p226 = scmp.ne.s32.totalorder %s212, %s213
      %p227 = scmp.eq.s32.totalorder %s37, 1
      %p228 = por %p226, %p227
      %p230 = scmp.ne.s32.totalorder %s213, %s229
      %p231 = scmp.eq.s32.totalorder %s37, 0
      %p232 = por %p230, %p231
      %s233 = ssub.s32 %s38, %s50
      %s234 = ssub.s32 %s39, %s46
      %s235 = sor.u32 %s233, %s234
      %p236 = scmp.eq.s32.totalorder %s235, 0
      %s238 = sadd.s32 %s237, 1
      %s239 = scalar_select %p236, %s237, %s238
      %p242 = pneg %p236
      %p243 = scmp.eq.s32.totalorder %s31, 1
      %p244 = por %p242, %p243
      %p245 = scmp.ne.s32.totalorder %s237, %s240
      %p246 = scmp.eq.s32.totalorder %s31, 0
      %p247 = por %p245, %p246
      %p248 = scmp.ne.s32.totalorder %s237, %s240
      %p249 = scmp.eq.s32.totalorder %s36, 1
      %p250 = por %p248, %p249
      %p251 = scmp.ne.s32.totalorder %s240, %s241
      %p252 = scmp.eq.s32.totalorder %s36, 0
      %p253 = por %p251, %p252
      %p254 = scmp.ne.s32.totalorder %s240, %s241
      %p255 = scmp.eq.s32.totalorder %s37, 1
      %p256 = por %p254, %p255
      %p258 = scmp.ne.s32.totalorder %s241, %s257
      %p259 = scmp.eq.s32.totalorder %s37, 0
      %p260 = por %p258, %p259
      %s261 = ssub.s32 %s38, %s50
      %s262 = ssub.s32 %s39, %s46
      %s263 = sor.u32 %s261, %s262
      %p264 = scmp.eq.s32.totalorder %s263, 0
      %s266 = sadd.s32 %s265, 1
      %s267 = scalar_select %p264, %s265, %s266
      %p270 = pneg %p264
      %p271 = scmp.eq.s32.totalorder %s31, 1
      %p272 = por %p270, %p271
      %p273 = scmp.ne.s32.totalorder %s265, %s268
      %p274 = scmp.eq.s32.totalorder %s31, 0
      %p275 = por %p273, %p274
      %p276 = scmp.ne.s32.totalorder %s265, %s268
      %p277 = scmp.eq.s32.totalorder %s36, 1
      %p278 = por %p276, %p277
      %p279 = scmp.ne.s32.totalorder %s268, %s269
      %p280 = scmp.eq.s32.totalorder %s36, 0
      %p281 = por %p279, %p280
      %p282 = scmp.ne.s32.totalorder %s268, %s269
      %p283 = scmp.eq.s32.totalorder %s37, 1
      %p284 = por %p282, %p283
      %p286 = scmp.ne.s32.totalorder %s269, %s285
      %p287 = scmp.eq.s32.totalorder %s37, 0
      %p288 = por %p286, %p287
      %p289 = scmp.le.s32.totalorder 1, %s31
      %p290 = scmp.lt.s32.totalorder %s31, 3
      %p291 = pnand %p289, %p290
      %p292 = pneg %p291
      // Predicated region
      $region9: #{tpu_custom_call.1} parent=5 // pred_check
        _
      $region10: #{tpu_custom_call.1} parent=5 // pred_check_branch
        %294 = sbr.rel (%p291) target = $region12
      $region11: #{tpu_custom_call.1} parent=5 // pred_region
        %s295 = ssub.s32 %s31, 1
        // Predicated region
        $region13: #{tpu_custom_call.1} parent=11 // pred_check
          %p296 = pneg %p92
        $region14: #{tpu_custom_call.1} parent=11 // pred_check_branch
          %298 = sbr.rel (%p296) target = $region16
        $region15: #{tpu_custom_call.1} parent=11 // pred_region
          %s300 = ssub.s32 64, 64
          %301 = vsyncadd [#allocation6], %s300
          %s303 = sshll.u32 [#allocation5], 4
          %s304 = int_to_ptr.vmem [resolvable:$true] %s303
          %306 = dma.hbm_to_vmem [thread:$0]  %s1, 64, %s304, [#allocation6]
        $region16: #{tpu_custom_call.1} parent=11 // pred_fallthru
          _
        // Predicated region
        $region17: #{tpu_custom_call.1} parent=11 // pred_check
          %p307 = pneg %p113
        $region18: #{tpu_custom_call.1} parent=11 // pred_check_branch
          %309 = sbr.rel (%p307) target = $region20
        $region19: #{tpu_custom_call.1} parent=11 // pred_region
          %s311 = ssub.s32 64, 64
          %312 = vsyncadd [#allocation6], %s311
          %s314 = sshll.u32 [#allocation7], 4
          %s315 = int_to_ptr.vmem [resolvable:$true] %s314
          %317 = dma.hbm_to_vmem [thread:$0]  %s2, 64, %s315, [#allocation6]
        $region20: #{tpu_custom_call.1} parent=11 // pred_fallthru
          _
      $region12: #{tpu_custom_call.1} parent=5 // pred_fallthru
        _
      %p318 = scmp.lt.s32.totalorder %s31, 2
      // Predicated region
      $region21: #{tpu_custom_call.1} parent=5 // pred_check
        %p319 = pneg %p318
      $region22: #{tpu_custom_call.1} parent=5 // pred_check_branch
        %321 = sbr.rel (%p319) target = $region24
      $region23: #{tpu_custom_call.1} parent=5 // pred_region
        // Predicated region
        $region25: #{tpu_custom_call.1} parent=23 // pred_check
          %p322 = pneg %p65
        $region26: #{tpu_custom_call.1} parent=23 // pred_check_branch
          %324 = sbr.rel (%p322) target = $region28
        $region27: #{tpu_custom_call.1} parent=23 // pred_region
          %s325 = sand.u32 %s55, 1
          %s326 = scalar_lea.sflag [#allocation3], %s325
          %s327 = sand.u32 %s55, 1
          %s328 = smul.addr %s327, 8
          %s329 = scalar_lea.vmem [#allocation2], %s328
          %s331 = ssub.s32 128, 128
          %332 = vsyncadd %s326, %s331
          %s333 = sadd.s32 %s39, %s38
          %s334 = smul.addr %s333, 128
          %s335 = scalar_lea.hbm %s0, %s334
          %s337 = sshll.u32 %s329, 4
          %s338 = int_to_ptr.vmem [resolvable:$true] %s337
          %340 = dma.hbm_to_vmem [thread:$0]  %s335, 128, %s338, %s326
        $region28: #{tpu_custom_call.1} parent=23 // pred_fallthru
          _
        // Predicated region
        $region29: #{tpu_custom_call.1} parent=23 // pred_check
          %p341 = pneg %p135
        $region30: #{tpu_custom_call.1} parent=23 // pred_check_branch
          %343 = sbr.rel (%p341) target = $region32
        $region31: #{tpu_custom_call.1} parent=23 // pred_region
          %s344 = sand.u32 %s31, 1
          %s345 = scalar_lea.sflag [#allocation9], %s344
          %s346 = sand.u32 %s125, 1
          %s347 = smul.addr %s346, 32
          %s348 = scalar_lea.vmem [#allocation8], %s347
          %s350 = ssub.s32 512, 512
          %351 = vsyncadd %s345, %s350
          %s352 = smul.addr %s38, 4
          %s353 = sadd.s32 %s39, %s352
          %s354 = smul.addr %s353, 128
          %s355 = scalar_lea.hbm %s3, %s354
          %s356 = sshll.u32 %s348, 4
          %s357 = int_to_ptr.vmem [resolvable:$true] %s356
          %362 = dma.hbm_to_vmem [thread:$0]  %s355, 512, %s357, %s345, 128, 128, 8
        $region32: #{tpu_custom_call.1} parent=23 // pred_fallthru
          _
        // Predicated region
        $region33: #{tpu_custom_call.1} parent=23 // pred_check
          %p363 = pneg %p163
        $region34: #{tpu_custom_call.1} parent=23 // pred_check_branch
          %365 = sbr.rel (%p363) target = $region36
        $region35: #{tpu_custom_call.1} parent=23 // pred_region
          %s366 = sand.u32 %s31, 1
          %s367 = scalar_lea.sflag [#allocation9], %s366
          %s368 = sand.u32 %s153, 1
          %s369 = smul.addr %s368, 32
          %s370 = scalar_lea.vmem [#allocation10], %s369
          %s372 = ssub.s32 512, 512
          %373 = vsyncadd %s367, %s372
          %s374 = smul.addr %s38, 4
          %s375 = sadd.s32 %s39, %s374
          %s376 = smul.addr %s375, 128
          %s377 = scalar_lea.hbm %s4, %s376
          %s378 = sshll.u32 %s370, 4
          %s379 = int_to_ptr.vmem [resolvable:$true] %s378
          %384 = dma.hbm_to_vmem [thread:$0]  %s377, 512, %s379, %s367, 128, 128, 8
        $region36: #{tpu_custom_call.1} parent=23 // pred_fallthru
          _
        // Predicated region
        $region37: #{tpu_custom_call.1} parent=23 // pred_check
          %p385 = pneg %p191
        $region38: #{tpu_custom_call.1} parent=23 // pred_check_branch
          %387 = sbr.rel (%p385) target = $region40
        $region39: #{tpu_custom_call.1} parent=23 // pred_region
          %s388 = sand.u32 %s181, 1
          %s389 = scalar_lea.sflag [#allocation12], %s388
          %s390 = sand.u32 %s181, 1
          %s391 = smul.addr %s390, 32
          %s392 = scalar_lea.vmem [#allocation11], %s391
          %s394 = ssub.s32 512, 512
          %395 = vsyncadd %s389, %s394
          %s396 = smul.addr %s38, 4
          %s397 = sadd.s32 %s39, %s396
          %s398 = smul.addr %s397, 128
          %s399 = scalar_lea.hbm %s5, %s398
          %s400 = sshll.u32 %s392, 4
          %s401 = int_to_ptr.vmem [resolvable:$true] %s400
          %406 = dma.hbm_to_vmem [thread:$0]  %s399, 512, %s401, %s389, 128, 128, 8
        $region40: #{tpu_custom_call.1} parent=23 // pred_fallthru
          _
      $region24: #{tpu_custom_call.1} parent=5 // pred_fallthru
        _
      %p407 = scmp.le.s32.totalorder 1, %s31
      %p408 = scmp.lt.s32.totalorder %s31, 3
      %p409 = pnand %p407, %p408
      %p410 = pneg %p409
      // Predicated region
      $region41: #{tpu_custom_call.1} parent=5 // pred_check
        _
      $region42: #{tpu_custom_call.1} parent=5 // pred_check_branch
        %412 = sbr.rel (%p409) target = $region44
      $region43: #{tpu_custom_call.1} parent=5 // pred_region
        %s413 = ssub.s32 %s31, 1
        %s414 = sand.u32 %s58, 1
        %s415 = scalar_lea.sflag [#allocation3], %s414
        %s416 = sand.u32 %s58, 1
        %s417 = smul.addr %s416, 8
        %s418 = scalar_lea.vmem [#allocation2], %s417
        // Predicated region
        $region45: #{tpu_custom_call.1} parent=43 // pred_check
          %p419 = pneg %p71
        $region46: #{tpu_custom_call.1} parent=43 // pred_check_branch
          %421 = sbr.rel (%p419) target = $region48
        $region47: #{tpu_custom_call.1} parent=43 // pred_region
          %422 = dma.done %s415, 128
        $region48: #{tpu_custom_call.1} parent=43 // pred_fallthru
          _
        // Predicated region
        $region49: #{tpu_custom_call.1} parent=43 // pred_check
          %p423 = pneg %p92
        $region50: #{tpu_custom_call.1} parent=43 // pred_check_branch
          %425 = sbr.rel (%p423) target = $region52
        $region51: #{tpu_custom_call.1} parent=43 // pred_region
          %426 = dma.done [#allocation6], 64
        $region52: #{tpu_custom_call.1} parent=43 // pred_fallthru
          _
        // Predicated region
        $region53: #{tpu_custom_call.1} parent=43 // pred_check
          %p427 = pneg %p113
        $region54: #{tpu_custom_call.1} parent=43 // pred_check_branch
          %429 = sbr.rel (%p427) target = $region56
        $region55: #{tpu_custom_call.1} parent=43 // pred_region
          %430 = dma.done [#allocation6], 64
        $region56: #{tpu_custom_call.1} parent=43 // pred_fallthru
          _
        %s431 = sand.u32 %s36, 1
        %s432 = scalar_lea.sflag [#allocation9], %s431
        %s433 = sand.u32 %s128, 1
        %s434 = smul.addr %s433, 32
        %s435 = scalar_lea.vmem [#allocation8], %s434
        // Predicated region
        $region57: #{tpu_custom_call.1} parent=43 // pred_check
          %p436 = pneg %p141
        $region58: #{tpu_custom_call.1} parent=43 // pred_check_branch
          %438 = sbr.rel (%p436) target = $region60
        $region59: #{tpu_custom_call.1} parent=43 // pred_region
          %439 = dma.done %s432, 512
        $region60: #{tpu_custom_call.1} parent=43 // pred_fallthru
          _
        %s440 = sand.u32 %s36, 1
        %s441 = scalar_lea.sflag [#allocation9], %s440
        %s442 = sand.u32 %s156, 1
        %s443 = smul.addr %s442, 32
        %s444 = scalar_lea.vmem [#allocation10], %s443
        // Predicated region
        $region61: #{tpu_custom_call.1} parent=43 // pred_check
          %p445 = pneg %p169
        $region62: #{tpu_custom_call.1} parent=43 // pred_check_branch
          %447 = sbr.rel (%p445) target = $region64
        $region63: #{tpu_custom_call.1} parent=43 // pred_region
          %448 = dma.done %s441, 512
        $region64: #{tpu_custom_call.1} parent=43 // pred_fallthru
          _
        %s449 = sand.u32 %s184, 1
        %s450 = scalar_lea.sflag [#allocation12], %s449
        %s451 = sand.u32 %s184, 1
        %s452 = smul.addr %s451, 32
        %s453 = scalar_lea.vmem [#allocation11], %s452
        // Predicated region
        $region65: #{tpu_custom_call.1} parent=43 // pred_check
          %p454 = pneg %p197
        $region66: #{tpu_custom_call.1} parent=43 // pred_check_branch
          %456 = sbr.rel (%p454) target = $region68
        $region67: #{tpu_custom_call.1} parent=43 // pred_region
          %457 = dma.done %s450, 512
        $region68: #{tpu_custom_call.1} parent=43 // pred_fallthru
          _
        %s458 = sand.u32 %s58, 1
        %s459 = scalar_lea.sflag [#allocation3], %s458
        %s460 = sand.u32 %s58, 1
        %s461 = smul.addr %s460, 8
        %s462 = scalar_lea.vmem [#allocation2], %s461
        %p463 = pneg %p71
        %p464 = pneg %p68
        %p465 = pneg %p92
        %p466 = pneg %p89
        %p467 = pneg %p113
        %p468 = pneg %p110
        %s469 = sand.u32 %s36, 1
        %s470 = scalar_lea.sflag [#allocation9], %s469
        %s471 = sand.u32 %s128, 1
        %s472 = smul.addr %s471, 32
        %s473 = scalar_lea.vmem [#allocation8], %s472
        %p474 = pneg %p141
        %p475 = pneg %p138
        %s476 = sand.u32 %s36, 1
        %s477 = scalar_lea.sflag [#allocation9], %s476
        %s478 = sand.u32 %s156, 1
        %s479 = smul.addr %s478, 32
        %s480 = scalar_lea.vmem [#allocation10], %s479
        %p481 = pneg %p169
        %p482 = pneg %p166
        %s483 = sand.u32 %s184, 1
        %s484 = scalar_lea.sflag [#allocation12], %s483
        %s485 = sand.u32 %s184, 1
        %s486 = smul.addr %s485, 32
        %s487 = scalar_lea.vmem [#allocation11], %s486
        %p488 = pneg %p197
        %p489 = pneg %p194
        %p490 = pneg %p225
        %p491 = pneg %p222
        %s492 = sand.u32 %s212, 1
        %s493 = scalar_lea.sflag [#allocation4], %s492
        %s494 = sand.u32 %s212, 1
        %s495 = smul.addr %s494, 32
        %s496 = scalar_lea.vmem [#allocation13], %s495
        %p497 = pneg %p253
        %p498 = pneg %p250
        %s499 = sand.u32 %s36, 1
        %s500 = scalar_lea.sflag [#allocation15], %s499
        %s501 = sand.u32 %s240, 1
        %s502 = smul.addr %s501, 32
        %s503 = scalar_lea.vmem [#allocation14], %s502
        %p504 = pneg %p281
        %p505 = pneg %p278
        %s506 = sand.u32 %s36, 1
        %s507 = scalar_lea.sflag [#allocation15], %s506
        %s508 = sand.u32 %s268, 1
        %s509 = smul.addr %s508, 32
        %s510 = scalar_lea.vmem [#allocation16], %s509
        %v511 = vld [vmem:[%s418] sm:$0xff]
        %v512 = vld [vmem:[#allocation5] sm:$0xf]
        %vm513 = vcmask 261120
        %v515 = vsel %vm513, %v511, 0
        %v518 = vsel %vm513, %v512, 0
        %520 = vmatprep.subr.mxu0 0.0
        %521 = vmatpush1.xpose.msra.mxu0 %v518
        %522 = vmatprep.subr.mxu0 0.0
        %523 = vmatpush1.xpose.msra.mxu0 0.0
        %524 = vmatprep.subr.mxu0 0.0
        %525 = vmatpush1.xpose.msra.mxu0 0.0
        %526 = vmatprep.subr.mxu0 0.0
        %527 = vmatpush1.xpose.msra.mxu0 0.0
        %528 = vmatprep.subr.mxu0 0.0
        %529 = vmatpush1.xpose.msra.mxu0 0.0
        %530 = vmatprep.subr.mxu0 0.0
        %531 = vmatpush1.xpose.msra.mxu0 0.0
        %532 = vmatprep.subr.mxu0 0.0
        %533 = vmatpush1.xpose.msra.mxu0 0.0
        %534 = vmatprep.subr.mxu0 0.0
        %535 = vmatpush1.xpose.msra.mxu0 0.0
        %536 = vmatprep.subr.mxu0 0.0
        %537 = vmatpush1.xpose.msra.mxu0 0.0
        %538 = vmatprep.subr.mxu0 0.0
        %539 = vmatpush1.xpose.msra.mxu0 0.0
        %540 = vmatprep.subr.mxu0 0.0
        %541 = vmatpush1.xpose.msra.mxu0 0.0
        %542 = vmatprep.subr.mxu0 0.0
        %543 = vmatpush1.xpose.msra.mxu0 0.0
        %544 = vmatprep.subr.mxu0 0.0
        %545 = vmatpush1.xpose.msra.mxu0 0.0
        %546 = vmatprep.subr.mxu0 0.0
        %547 = vmatpush1.xpose.msra.mxu0 0.0
        %548 = vmatprep.subr.mxu0 0.0
        %549 = vmatpush1.xpose.msra.mxu0 0.0
        %550 = vmatprep.subr.mxu0 0.0
        %551 = vmatpush1.xpose.msra.mxu0 0.0
        %552 = vmatprep.subr.mxu0 0.0
        %553 = vmatpush1.xpose.msra.mxu0 0.0
        %554 = vmatprep.subr.mxu0 0.0
        %555 = vmatpush1.xpose.msra.mxu0 0.0
        %556 = vmatprep.subr.mxu0 0.0
        %557 = vmatpush1.xpose.msra.mxu0 0.0
        %558 = vmatprep.subr.mxu0 0.0
        %559 = vmatpush1.xpose.msra.mxu0 0.0
        %560 = vmatprep.subr.mxu0 0.0
        %561 = vmatpush1.xpose.msra.mxu0 0.0
        %562 = vmatprep.subr.mxu0 0.0
        %563 = vmatpush1.xpose.msra.mxu0 0.0
        %564 = vmatprep.subr.mxu0 0.0
        %565 = vmatpush1.xpose.msra.mxu0 0.0
        %566 = vmatprep.subr.mxu0 0.0
        %567 = vmatpush1.xpose.msra.mxu0 0.0
        %568 = vmatprep.subr.mxu0 0.0
        %569 = vmatpush1.xpose.msra.mxu0 0.0
        %570 = vmatprep.subr.mxu0 0.0
        %571 = vmatpush1.xpose.msra.mxu0 0.0
        %572 = vmatprep.subr.mxu0 0.0
        %573 = vmatpush1.xpose.msra.mxu0 0.0
        %574 = vmatprep.subr.mxu0 0.0
        %575 = vmatpush1.xpose.msra.mxu0 0.0
        %576 = vmatprep.subr.mxu0 0.0
        %577 = vmatpush1.xpose.msra.mxu0 0.0
        %578 = vmatprep.subr.mxu0 0.0
        %579 = vmatpush1.xpose.msra.mxu0 0.0
        %580 = vmatprep.subr.mxu0 0.0
        %581 = vmatpush1.xpose.msra.mxu0 0.0
        %582 = vmatprep.subr.mxu0 0.0
        %583 = vmatpush1.xpose.msra.mxu0 0.0
        %584 = vmatprep.mubr.f32.mxu0 0.0
        %585 = vmatmul.mubr.f32.gmra.mrb[0].mxu0 %v515
        %v586 = vpop.f32.mrb[0].mxu0
        %v587 = vadd.f32 0.0, %v586
        %v588 = vpop.f32.mrb[0].mxu0
        %589 = vdwg.mxu0
        %v590 = vld [vmem:[#allocation7] sm:$0xf]
        %vm591 = vcmask 31744
        %v593 = vsel %vm591, %v587, 0
        %vm595 = vcmask 1043456
        %v597 = vsel %vm595, %v590, 0
        %599 = vmatprep.subr.mxu0 0.0
        %600 = vmatpush1.msra.mxu0 %v597
        %601 = vmatprep.subr.mxu0 0.0
        %602 = vmatpush1.msra.mxu0 0.0
        %603 = vmatprep.subr.mxu0 0.0
        %604 = vmatpush1.msra.mxu0 0.0
        %605 = vmatprep.subr.mxu0 0.0
        %606 = vmatpush1.msra.mxu0 0.0
        %607 = vmatprep.subr.mxu0 0.0
        %608 = vmatpush1.msra.mxu0 0.0
        %609 = vmatprep.subr.mxu0 0.0
        %610 = vmatpush1.msra.mxu0 0.0
        %611 = vmatprep.subr.mxu0 0.0
        %612 = vmatpush1.msra.mxu0 0.0
        %613 = vmatprep.subr.mxu0 0.0
        %614 = vmatpush1.msra.mxu0 0.0
        %615 = vmatprep.subr.mxu0 0.0
        %616 = vmatpush1.msra.mxu0 0.0
        %617 = vmatprep.subr.mxu0 0.0
        %618 = vmatpush1.msra.mxu0 0.0
        %619 = vmatprep.subr.mxu0 0.0
        %620 = vmatpush1.msra.mxu0 0.0
        %621 = vmatprep.subr.mxu0 0.0
        %622 = vmatpush1.msra.mxu0 0.0
        %623 = vmatprep.subr.mxu0 0.0
        %624 = vmatpush1.msra.mxu0 0.0
        %625 = vmatprep.subr.mxu0 0.0
        %626 = vmatpush1.msra.mxu0 0.0
        %627 = vmatprep.subr.mxu0 0.0
        %628 = vmatpush1.msra.mxu0 0.0
        %629 = vmatprep.subr.mxu0 0.0
        %630 = vmatpush1.msra.mxu0 0.0
        %631 = vmatprep.subr.mxu0 0.0
        %632 = vmatpush1.msra.mxu0 0.0
        %633 = vmatprep.subr.mxu0 0.0
        %634 = vmatpush1.msra.mxu0 0.0
        %635 = vmatprep.subr.mxu0 0.0
        %636 = vmatpush1.msra.mxu0 0.0
        %637 = vmatprep.subr.mxu0 0.0
        %638 = vmatpush1.msra.mxu0 0.0
        %639 = vmatprep.subr.mxu0 0.0
        %640 = vmatpush1.msra.mxu0 0.0
        %641 = vmatprep.subr.mxu0 0.0
        %642 = vmatpush1.msra.mxu0 0.0
        %643 = vmatprep.subr.mxu0 0.0
        %644 = vmatpush1.msra.mxu0 0.0
        %645 = vmatprep.subr.mxu0 0.0
        %646 = vmatpush1.msra.mxu0 0.0
        %647 = vmatprep.subr.mxu0 0.0
        %648 = vmatpush1.msra.mxu0 0.0
        %649 = vmatprep.subr.mxu0 0.0
        %650 = vmatpush1.msra.mxu0 0.0
        %651 = vmatprep.subr.mxu0 0.0
        %652 = vmatpush1.msra.mxu0 0.0
        %653 = vmatprep.subr.mxu0 0.0
        %654 = vmatpush1.msra.mxu0 0.0
        %655 = vmatprep.subr.mxu0 0.0
        %656 = vmatpush1.msra.mxu0 0.0
        %657 = vmatprep.subr.mxu0 0.0
        %658 = vmatpush1.msra.mxu0 0.0
        %659 = vmatprep.subr.mxu0 0.0
        %660 = vmatpush1.msra.mxu0 0.0
        %661 = vmatprep.subr.mxu0 0.0
        %662 = vmatpush1.msra.mxu0 0.0
        %663 = vmatprep.mubr.f32.mxu0 0.0
        %664 = vmatmul.mubr.f32.gmra.mrb[0].mxu0 %v593
        %v665 = vpop.f32.mrb[0].mxu0
        %v666 = vadd.f32 0.0, %v665
        %v667 = vpop.f32.mrb[0].mxu0
        %668 = vdwg.mxu0
        %670 = vrot.lane.b32.xlu0 %v666, 120
        %v671 = vpop.permute.xlu0 %670
        %673 = vrot.lane.b32.xlu0 %v666, 112
        %v674 = vpop.permute.xlu0 %673
        %676 = vrot.lane.b32.xlu0 %v666, 104
        %v677 = vpop.permute.xlu0 %676
        %v679 = vcombine.low %v666, %v674
        %v680 = vcombine.high %v666, %v674
        %v682 = vunpack.c.l.s4 1983009808
        %v683 = vunpack.c.0.s8 %v682
        %v684 = vlaneseq
        %v685 = vshrl.u32 %v684, 7
        %v686 = vsub.s32 %v683, %v685
        %v687 = vrot.slane %v679, %v686
        %v689 = vunpack.c.l.s4 1983009808
        %v690 = vunpack.c.0.s8 %v689
        %v691 = vlaneseq
        %v692 = vshrl.u32 %v691, 7
        %v693 = vsub.s32 %v690, %v692
        %v694 = vrot.slane %v680, %v693
        %v695 = vcombine.low %v671, %v677
        %v696 = vcombine.high %v671, %v677
        %v698 = vunpack.c.l.s4 1983009808
        %v699 = vunpack.c.0.s8 %v698
        %v700 = vlaneseq
        %v701 = vshrl.u32 %v700, 7
        %v702 = vsub.s32 %v699, %v701
        %v703 = vrot.slane %v695, %v702
        %v705 = vunpack.c.l.s4 1983009808
        %v706 = vunpack.c.0.s8 %v705
        %v707 = vlaneseq
        %v708 = vshrl.u32 %v707, 7
        %v709 = vsub.s32 %v706, %v708
        %v710 = vrot.slane %v696, %v709
        %v711 = vcombine.low %v687, %v703
        %v712 = vcombine.high %v687, %v703
        %v714 = vunpack.c.l.s4 1934713408
        %v715 = vunpack.c.0.s8 %v714
        %v716 = vlaneseq
        %v717 = vshrl.u32 %v716, 7
        %v718 = vsub.s32 %v715, %v717
        %v719 = vrot.slane %v711, %v718
        %v721 = vunpack.c.l.s4 1934713408
        %v722 = vunpack.c.0.s8 %v721
        %v723 = vlaneseq
        %v724 = vshrl.u32 %v723, 7
        %v725 = vsub.s32 %v722, %v724
        %v726 = vrot.slane %v712, %v725
        %v727 = vcombine.low %v694, %v710
        %v728 = vcombine.high %v694, %v710
        %v730 = vunpack.c.l.s4 1934713408
        %v731 = vunpack.c.0.s8 %v730
        %v732 = vlaneseq
        %v733 = vshrl.u32 %v732, 7
        %v734 = vsub.s32 %v731, %v733
        %v735 = vrot.slane %v727, %v734
        %v737 = vunpack.c.l.s4 1934713408
        %v738 = vunpack.c.0.s8 %v737
        %v739 = vlaneseq
        %v740 = vshrl.u32 %v739, 7
        %v741 = vsub.s32 %v738, %v740
        %v742 = vrot.slane %v728, %v741
        %v743 = vcombine.high %v719, 0.0
        %v744 = vcombine.high %v726, 0.0
        %v745 = vcombine.high %v735, 0.0
        %v746 = vcombine.high %v742, 0.0
        %v747 = vcombine.low %v719, %v726
        %v749 = vunpack.c.l.s4 1983009808
        %v750 = vunpack.c.0.s8 %v749
        %v751 = vlaneseq
        %v752 = vshrl.u32 %v751, 7
        %v753 = vsub.s32 %v750, %v752
        %v754 = vrot.slane %v747, %v753
        %v755 = vcombine.low %v743, %v744
        %v757 = vunpack.c.l.s4 1983009808
        %v758 = vunpack.c.0.s8 %v757
        %v759 = vlaneseq
        %v760 = vshrl.u32 %v759, 7
        %v761 = vsub.s32 %v758, %v760
        %v762 = vrot.slane %v755, %v761
        %v763 = vcombine.low %v735, %v742
        %v765 = vunpack.c.l.s4 1983009808
        %v766 = vunpack.c.0.s8 %v765
        %v767 = vlaneseq
        %v768 = vshrl.u32 %v767, 7
        %v769 = vsub.s32 %v766, %v768
        %v770 = vrot.slane %v763, %v769
        %v771 = vcombine.low %v745, %v746
        %v773 = vunpack.c.l.s4 1983009808
        %v774 = vunpack.c.0.s8 %v773
        %v775 = vlaneseq
        %v776 = vshrl.u32 %v775, 7
        %v777 = vsub.s32 %v774, %v776
        %v778 = vrot.slane %v771, %v777
        %v779 = vcombine.low %v754, %v762
        %v780 = vcombine.high %v754, %v762
        %v782 = vunpack.c.l.s4 1934713408
        %v783 = vunpack.c.0.s8 %v782
        %v784 = vlaneseq
        %v785 = vshrl.u32 %v784, 7
        %v786 = vsub.s32 %v783, %v785
        %v787 = vrot.slane %v779, %v786
        %v789 = vunpack.c.l.s4 1934713408
        %v790 = vunpack.c.0.s8 %v789
        %v791 = vlaneseq
        %v792 = vshrl.u32 %v791, 7
        %v793 = vsub.s32 %v790, %v792
        %v794 = vrot.slane %v780, %v793
        %v795 = vcombine.low %v770, %v778
        %v796 = vcombine.high %v770, %v778
        %v798 = vunpack.c.l.s4 1934713408
        %v799 = vunpack.c.0.s8 %v798
        %v800 = vlaneseq
        %v801 = vshrl.u32 %v800, 7
        %v802 = vsub.s32 %v799, %v801
        %v803 = vrot.slane %v795, %v802
        %v805 = vunpack.c.l.s4 1934713408
        %v806 = vunpack.c.0.s8 %v805
        %v807 = vlaneseq
        %v808 = vshrl.u32 %v807, 7
        %v809 = vsub.s32 %v806, %v808
        %v810 = vrot.slane %v796, %v809
        %v811 = vcombine.low %v787, %v803
        %v812 = vcombine.high %v787, %v803
        %v813 = vcombine.low %v794, %v810
        %v814 = vcombine.high %v794, %v810
        %815 = vrot.lane.b32.xlu0 %v666, 96
        %v816 = vpop.permute.xlu0 %815
        %817 = vrot.lane.b32.xlu0 %v671, 96
        %v818 = vpop.permute.xlu0 %817
        %819 = vrot.lane.b32.xlu0 %v674, 96
        %v820 = vpop.permute.xlu0 %819
        %821 = vrot.lane.b32.xlu0 %v677, 96
        %v822 = vpop.permute.xlu0 %821
        %v827 = vcombine.low %v816, %v820
        %v828 = vcombine.high %v816, %v820
        %v830 = vunpack.c.l.s4 1983009808
        %v831 = vunpack.c.0.s8 %v830
        %v832 = vlaneseq
        %v833 = vshrl.u32 %v832, 7
        %v834 = vsub.s32 %v831, %v833
        %v835 = vrot.slane %v827, %v834
        %v837 = vunpack.c.l.s4 1983009808
        %v838 = vunpack.c.0.s8 %v837
        %v839 = vlaneseq
        %v840 = vshrl.u32 %v839, 7
        %v841 = vsub.s32 %v838, %v840
        %v842 = vrot.slane %v828, %v841
        %v843 = vcombine.low %v818, %v822
        %v844 = vcombine.high %v818, %v822
        %v846 = vunpack.c.l.s4 1983009808
        %v847 = vunpack.c.0.s8 %v846
        %v848 = vlaneseq
        %v849 = vshrl.u32 %v848, 7
        %v850 = vsub.s32 %v847, %v849
        %v851 = vrot.slane %v843, %v850
        %v853 = vunpack.c.l.s4 1983009808
        %v854 = vunpack.c.0.s8 %v853
        %v855 = vlaneseq
        %v856 = vshrl.u32 %v855, 7
        %v857 = vsub.s32 %v854, %v856
        %v858 = vrot.slane %v844, %v857
        %v859 = vcombine.low %v835, %v851
        %v860 = vcombine.high %v835, %v851
        %v862 = vunpack.c.l.s4 1934713408
        %v863 = vunpack.c.0.s8 %v862
        %v864 = vlaneseq
        %v865 = vshrl.u32 %v864, 7
        %v866 = vsub.s32 %v863, %v865
        %v867 = vrot.slane %v859, %v866
        %v869 = vunpack.c.l.s4 1934713408
        %v870 = vunpack.c.0.s8 %v869
        %v871 = vlaneseq
        %v872 = vshrl.u32 %v871, 7
        %v873 = vsub.s32 %v870, %v872
        %v874 = vrot.slane %v860, %v873
        %v875 = vcombine.low %v842, %v858
        %v876 = vcombine.high %v842, %v858
        %v878 = vunpack.c.l.s4 1934713408
        %v879 = vunpack.c.0.s8 %v878
        %v880 = vlaneseq
        %v881 = vshrl.u32 %v880, 7
        %v882 = vsub.s32 %v879, %v881
        %v883 = vrot.slane %v875, %v882
        %v885 = vunpack.c.l.s4 1934713408
        %v886 = vunpack.c.0.s8 %v885
        %v887 = vlaneseq
        %v888 = vshrl.u32 %v887, 7
        %v889 = vsub.s32 %v886, %v888
        %v890 = vrot.slane %v876, %v889
        %v891 = vcombine.high %v867, 0.0
        %v892 = vcombine.high %v874, 0.0
        %v893 = vcombine.high %v883, 0.0
        %v894 = vcombine.high %v890, 0.0
        %v895 = vcombine.low %v867, %v874
        %v897 = vunpack.c.l.s4 1983009808
        %v898 = vunpack.c.0.s8 %v897
        %v899 = vlaneseq
        %v900 = vshrl.u32 %v899, 7
        %v901 = vsub.s32 %v898, %v900
        %v902 = vrot.slane %v895, %v901
        %v903 = vcombine.low %v891, %v892
        %v905 = vunpack.c.l.s4 1983009808
        %v906 = vunpack.c.0.s8 %v905
        %v907 = vlaneseq
        %v908 = vshrl.u32 %v907, 7
        %v909 = vsub.s32 %v906, %v908
        %v910 = vrot.slane %v903, %v909
        %v911 = vcombine.low %v883, %v890
        %v913 = vunpack.c.l.s4 1983009808
        %v914 = vunpack.c.0.s8 %v913
        %v915 = vlaneseq
        %v916 = vshrl.u32 %v915, 7
        %v917 = vsub.s32 %v914, %v916
        %v918 = vrot.slane %v911, %v917
        %v919 = vcombine.low %v893, %v894
        %v921 = vunpack.c.l.s4 1983009808
        %v922 = vunpack.c.0.s8 %v921
        %v923 = vlaneseq
        %v924 = vshrl.u32 %v923, 7
        %v925 = vsub.s32 %v922, %v924
        %v926 = vrot.slane %v919, %v925
        %v927 = vcombine.low %v902, %v910
        %v928 = vcombine.high %v902, %v910
        %v930 = vunpack.c.l.s4 1934713408
        %v931 = vunpack.c.0.s8 %v930
        %v932 = vlaneseq
        %v933 = vshrl.u32 %v932, 7
        %v934 = vsub.s32 %v931, %v933
        %v935 = vrot.slane %v927, %v934
        %v937 = vunpack.c.l.s4 1934713408
        %v938 = vunpack.c.0.s8 %v937
        %v939 = vlaneseq
        %v940 = vshrl.u32 %v939, 7
        %v941 = vsub.s32 %v938, %v940
        %v942 = vrot.slane %v928, %v941
        %v943 = vcombine.low %v918, %v926
        %v944 = vcombine.high %v918, %v926
        %v946 = vunpack.c.l.s4 1934713408
        %v947 = vunpack.c.0.s8 %v946
        %v948 = vlaneseq
        %v949 = vshrl.u32 %v948, 7
        %v950 = vsub.s32 %v947, %v949
        %v951 = vrot.slane %v943, %v950
        %v953 = vunpack.c.l.s4 1934713408
        %v954 = vunpack.c.0.s8 %v953
        %v955 = vlaneseq
        %v956 = vshrl.u32 %v955, 7
        %v957 = vsub.s32 %v954, %v956
        %v958 = vrot.slane %v944, %v957
        %v959 = vcombine.low %v935, %v951
        %v960 = vcombine.high %v935, %v951
        %v961 = vcombine.low %v942, %v958
        %v962 = vcombine.high %v942, %v958
        %963 = vrot.lane.b32.xlu0 %v666, 64
        %v964 = vpop.permute.xlu0 %963
        %965 = vrot.lane.b32.xlu0 %v671, 64
        %v966 = vpop.permute.xlu0 %965
        %967 = vrot.lane.b32.xlu0 %v674, 64
        %v968 = vpop.permute.xlu0 %967
        %969 = vrot.lane.b32.xlu0 %v677, 64
        %v970 = vpop.permute.xlu0 %969
        %v975 = vcombine.low %v964, %v968
        %v976 = vcombine.high %v964, %v968
        %v978 = vunpack.c.l.s4 1983009808
        %v979 = vunpack.c.0.s8 %v978
        %v980 = vlaneseq
        %v981 = vshrl.u32 %v980, 7
        %v982 = vsub.s32 %v979, %v981
        %v983 = vrot.slane %v975, %v982
        %v985 = vunpack.c.l.s4 1983009808
        %v986 = vunpack.c.0.s8 %v985
        %v987 = vlaneseq
        %v988 = vshrl.u32 %v987, 7
        %v989 = vsub.s32 %v986, %v988
        %v990 = vrot.slane %v976, %v989
        %v991 = vcombine.low %v966, %v970
        %v992 = vcombine.high %v966, %v970
        %v994 = vunpack.c.l.s4 1983009808
        %v995 = vunpack.c.0.s8 %v994
        %v996 = vlaneseq
        %v997 = vshrl.u32 %v996, 7
        %v998 = vsub.s32 %v995, %v997
        %v999 = vrot.slane %v991, %v998
        %v1001 = vunpack.c.l.s4 1983009808
        %v1002 = vunpack.c.0.s8 %v1001
        %v1003 = vlaneseq
        %v1004 = vshrl.u32 %v1003, 7
        %v1005 = vsub.s32 %v1002, %v1004
        %v1006 = vrot.slane %v992, %v1005
        %v1007 = vcombine.low %v983, %v999
        %v1008 = vcombine.high %v983, %v999
        %v1010 = vunpack.c.l.s4 1934713408
        %v1011 = vunpack.c.0.s8 %v1010
        %v1012 = vlaneseq
        %v1013 = vshrl.u32 %v1012, 7
        %v1014 = vsub.s32 %v1011, %v1013
        %v1015 = vrot.slane %v1007, %v1014
        %v1017 = vunpack.c.l.s4 1934713408
        %v1018 = vunpack.c.0.s8 %v1017
        %v1019 = vlaneseq
        %v1020 = vshrl.u32 %v1019, 7
        %v1021 = vsub.s32 %v1018, %v1020
        %v1022 = vrot.slane %v1008, %v1021
        %v1023 = vcombine.low %v990, %v1006
        %v1024 = vcombine.high %v990, %v1006
        %v1026 = vunpack.c.l.s4 1934713408
        %v1027 = vunpack.c.0.s8 %v1026
        %v1028 = vlaneseq
        %v1029 = vshrl.u32 %v1028, 7
        %v1030 = vsub.s32 %v1027, %v1029
        %v1031 = vrot.slane %v1023, %v1030
        %v1033 = vunpack.c.l.s4 1934713408
        %v1034 = vunpack.c.0.s8 %v1033
        %v1035 = vlaneseq
        %v1036 = vshrl.u32 %v1035, 7
        %v1037 = vsub.s32 %v1034, %v1036
        %v1038 = vrot.slane %v1024, %v1037
        %v1039 = vcombine.high %v1015, 0.0
        %v1040 = vcombine.high %v1022, 0.0
        %v1041 = vcombine.high %v1031, 0.0
        %v1042 = vcombine.high %v1038, 0.0
        %v1043 = vcombine.low %v1015, %v1022
        %v1045 = vunpack.c.l.s4 1983009808
        %v1046 = vunpack.c.0.s8 %v1045
        %v1047 = vlaneseq
        %v1048 = vshrl.u32 %v1047, 7
        %v1049 = vsub.s32 %v1046, %v1048
        %v1050 = vrot.slane %v1043, %v1049
        %v1051 = vcombine.low %v1039, %v1040
        %v1053 = vunpack.c.l.s4 1983009808
        %v1054 = vunpack.c.0.s8 %v1053
        %v1055 = vlaneseq
        %v1056 = vshrl.u32 %v1055, 7
        %v1057 = vsub.s32 %v1054, %v1056
        %v1058 = vrot.slane %v1051, %v1057
        %v1059 = vcombine.low %v1031, %v1038
        %v1061 = vunpack.c.l.s4 1983009808
        %v1062 = vunpack.c.0.s8 %v1061
        %v1063 = vlaneseq
        %v1064 = vshrl.u32 %v1063, 7
        %v1065 = vsub.s32 %v1062, %v1064
        %v1066 = vrot.slane %v1059, %v1065
        %v1067 = vcombine.low %v1041, %v1042
        %v1069 = vunpack.c.l.s4 1983009808
        %v1070 = vunpack.c.0.s8 %v1069
        %v1071 = vlaneseq
        %v1072 = vshrl.u32 %v1071, 7
        %v1073 = vsub.s32 %v1070, %v1072
        %v1074 = vrot.slane %v1067, %v1073
        %v1075 = vcombine.low %v1050, %v1058
        %v1076 = vcombine.high %v1050, %v1058
        %v1078 = vunpack.c.l.s4 1934713408
        %v1079 = vunpack.c.0.s8 %v1078
        %v1080 = vlaneseq
        %v1081 = vshrl.u32 %v1080, 7
        %v1082 = vsub.s32 %v1079, %v1081
        %v1083 = vrot.slane %v1075, %v1082
        %v1085 = vunpack.c.l.s4 1934713408
        %v1086 = vunpack.c.0.s8 %v1085
        %v1087 = vlaneseq
        %v1088 = vshrl.u32 %v1087, 7
        %v1089 = vsub.s32 %v1086, %v1088
        %v1090 = vrot.slane %v1076, %v1089
        %v1091 = vcombine.low %v1066, %v1074
        %v1092 = vcombine.high %v1066, %v1074
        %v1094 = vunpack.c.l.s4 1934713408
        %v1095 = vunpack.c.0.s8 %v1094
        %v1096 = vlaneseq
        %v1097 = vshrl.u32 %v1096, 7
        %v1098 = vsub.s32 %v1095, %v1097
        %v1099 = vrot.slane %v1091, %v1098
        %v1101 = vunpack.c.l.s4 1934713408
        %v1102 = vunpack.c.0.s8 %v1101
        %v1103 = vlaneseq
        %v1104 = vshrl.u32 %v1103, 7
        %v1105 = vsub.s32 %v1102, %v1104
        %v1106 = vrot.slane %v1092, %v1105
        %v1107 = vcombine.low %v1083, %v1099
        %v1108 = vcombine.high %v1083, %v1099
        %v1109 = vcombine.low %v1090, %v1106
        %v1110 = vcombine.high %v1090, %v1106
        %v1111 = vld [vmem:[%s435] sm:$0xff]
        %v1112 = vld [vmem:[%s435 + $0x8] sm:$0xff]
        %v1113 = vld [vmem:[%s435 + $0x10] sm:$0xff]
        %v1114 = vld [vmem:[%s435 + $0x18] sm:$0xff]
        %v1115 = vadd.f32 %v1111, %v811
        %v1116 = vadd.f32 %v1112, %v812
        %v1117 = vadd.f32 %v1113, %v813
        %v1118 = vadd.f32 %v1114, %v814
        %vm1119 = vcmask 64512
        %1120 = vst.msk [vmem:[%s496] sm:$0xff] %vm1119, %v1115
        %1121 = vst.msk [vmem:[%s496 + $0x8] sm:$0xff] %vm1119, %v1116
        %1122 = vst.msk [vmem:[%s496 + $0x10] sm:$0xff] %vm1119, %v1117
        %1123 = vst.msk [vmem:[%s496 + $0x18] sm:$0xff] %vm1119, %v1118
        %v1124 = vld [vmem:[%s444] sm:$0xff]
        %v1125 = vld [vmem:[%s444 + $0x8] sm:$0xff]
        %v1126 = vld [vmem:[%s444 + $0x10] sm:$0xff]
        %v1127 = vld [vmem:[%s444 + $0x18] sm:$0xff]
        %v1128 = vadd.f32 %v1124, %v959
        %v1129 = vadd.f32 %v1125, %v960
        %v1130 = vadd.f32 %v1126, %v961
        %v1131 = vadd.f32 %v1127, %v962
        %1132 = vst.msk [vmem:[%s503] sm:$0xff] %vm1119, %v1128
        %1133 = vst.msk [vmem:[%s503 + $0x8] sm:$0xff] %vm1119, %v1129
        %1134 = vst.msk [vmem:[%s503 + $0x10] sm:$0xff] %vm1119, %v1130
        %1135 = vst.msk [vmem:[%s503 + $0x18] sm:$0xff] %vm1119, %v1131
        %v1136 = vld [vmem:[%s453] sm:$0xff]
        %v1137 = vld [vmem:[%s453 + $0x8] sm:$0xff]
        %v1138 = vld [vmem:[%s453 + $0x10] sm:$0xff]
        %v1139 = vld [vmem:[%s453 + $0x18] sm:$0xff]
        %v1140 = vadd.f32 %v1136, %v1107
        %v1141 = vadd.f32 %v1137, %v1108
        %v1142 = vadd.f32 %v1138, %v1109
        %v1143 = vadd.f32 %v1139, %v1110
        %1144 = vst.msk [vmem:[%s510] sm:$0xff] %vm1119, %v1140
        %1145 = vst.msk [vmem:[%s510 + $0x8] sm:$0xff] %vm1119, %v1141
        %1146 = vst.msk [vmem:[%s510 + $0x10] sm:$0xff] %vm1119, %v1142
        %1147 = vst.msk [vmem:[%s510 + $0x18] sm:$0xff] %vm1119, %v1143
        %s1148 = sand.u32 %s212, 1
        %s1149 = scalar_lea.sflag [#allocation4], %s1148
        %s1150 = sand.u32 %s212, 1
        %s1151 = smul.addr %s1150, 32
        %s1152 = scalar_lea.vmem [#allocation13], %s1151
        %s1153 = sand.u32 %s36, 1
        %s1154 = scalar_lea.sflag [#allocation15], %s1153
        %s1155 = sand.u32 %s240, 1
        %s1156 = smul.addr %s1155, 32
        %s1157 = scalar_lea.vmem [#allocation14], %s1156
        %s1158 = sand.u32 %s36, 1
        %s1159 = scalar_lea.sflag [#allocation15], %s1158
        %s1160 = sand.u32 %s268, 1
        %s1161 = smul.addr %s1160, 32
        %s1162 = scalar_lea.vmem [#allocation16], %s1161
        // Predicated region
        $region69: #{tpu_custom_call.1} parent=43 // pred_check
          %p1163 = pneg %p222
        $region70: #{tpu_custom_call.1} parent=43 // pred_check_branch
          %1165 = sbr.rel (%p1163) target = $region72
        $region71: #{tpu_custom_call.1} parent=43 // pred_region
          %s1167 = ssub.s32 512, 512
          %1168 = vsyncadd %s1149, %s1167
          %s1169 = smul.addr %s40, 4
          %s1170 = sadd.s32 %s41, %s1169
          %s1171 = smul.addr %s1170, 128
          %s1172 = scalar_lea.hbm %s6, %s1171
          %s1173 = sshll.u32 %s1152, 4
          %s1174 = int_to_ptr.vmem [resolvable:$true] %s1173
          %1179 = dma.vmem_to_hbm [thread:$0]  %s1174, 512, %s1172, %s1149, 128, 128, 8
        $region72: #{tpu_custom_call.1} parent=43 // pred_fallthru
          _
        // Predicated region
        $region73: #{tpu_custom_call.1} parent=43 // pred_check
          %p1180 = pneg %p250
        $region74: #{tpu_custom_call.1} parent=43 // pred_check_branch
          %1182 = sbr.rel (%p1180) target = $region76
        $region75: #{tpu_custom_call.1} parent=43 // pred_region
          %s1184 = ssub.s32 512, 512
          %1185 = vsyncadd %s1154, %s1184
          %s1186 = smul.addr %s40, 4
          %s1187 = sadd.s32 %s41, %s1186
          %s1188 = smul.addr %s1187, 128
          %s1189 = scalar_lea.hbm %s7, %s1188
          %s1190 = sshll.u32 %s1157, 4
          %s1191 = int_to_ptr.vmem [resolvable:$true] %s1190
          %1196 = dma.vmem_to_hbm [thread:$0]  %s1191, 512, %s1189, %s1154, 128, 128, 8
        $region76: #{tpu_custom_call.1} parent=43 // pred_fallthru
          _
        // Predicated region
        $region77: #{tpu_custom_call.1} parent=43 // pred_check
          %p1197 = pneg %p278
        $region78: #{tpu_custom_call.1} parent=43 // pred_check_branch
          %1199 = sbr.rel (%p1197) target = $region80
        $region79: #{tpu_custom_call.1} parent=43 // pred_region
          %s1201 = ssub.s32 512, 512
          %1202 = vsyncadd %s1159, %s1201
          %s1203 = smul.addr %s40, 4
          %s1204 = sadd.s32 %s41, %s1203
          %s1205 = smul.addr %s1204, 128
          %s1206 = scalar_lea.hbm %s8, %s1205
          %s1207 = sshll.u32 %s1162, 4
          %s1208 = int_to_ptr.vmem [resolvable:$true] %s1207
          %1213 = dma.vmem_to_hbm [thread:$0]  %s1208, 512, %s1206, %s1159, 128, 128, 8
        $region80: #{tpu_custom_call.1} parent=43 // pred_fallthru
          _
      $region44: #{tpu_custom_call.1} parent=5 // pred_fallthru
        _
      %p1214 = scmp.le.s32.totalorder 2, %s31
      // Predicated region
      $region81: #{tpu_custom_call.1} parent=5 // pred_check
        %p1215 = pneg %p1214
      $region82: #{tpu_custom_call.1} parent=5 // pred_check_branch
        %1217 = sbr.rel (%p1215) target = $region84
      $region83: #{tpu_custom_call.1} parent=5 // pred_region
        %s1218 = ssub.s32 %s31, 2
        // Predicated region
        $region85: #{tpu_custom_call.1} parent=83 // pred_check
          %p1219 = pneg %p228
        $region86: #{tpu_custom_call.1} parent=83 // pred_check_branch
          %1221 = sbr.rel (%p1219) target = $region88
        $region87: #{tpu_custom_call.1} parent=83 // pred_region
          %s1222 = sand.u32 %s213, 1
          %s1223 = scalar_lea.sflag [#allocation4], %s1222
          %s1224 = sand.u32 %s213, 1
          %s1225 = smul.addr %s1224, 32
          %s1226 = scalar_lea.vmem [#allocation13], %s1225
          %1227 = dma.done %s1223, 512
        $region88: #{tpu_custom_call.1} parent=83 // pred_fallthru
          _
        // Predicated region
        $region89: #{tpu_custom_call.1} parent=83 // pred_check
          %p1228 = pneg %p256
        $region90: #{tpu_custom_call.1} parent=83 // pred_check_branch
          %1230 = sbr.rel (%p1228) target = $region92
        $region91: #{tpu_custom_call.1} parent=83 // pred_region
          %s1231 = sand.u32 %s37, 1
          %s1232 = scalar_lea.sflag [#allocation15], %s1231
          %s1233 = sand.u32 %s241, 1
          %s1234 = smul.addr %s1233, 32
          %s1235 = scalar_lea.vmem [#allocation14], %s1234
          %1236 = dma.done %s1232, 512
        $region92: #{tpu_custom_call.1} parent=83 // pred_fallthru
          _
        // Predicated region
        $region93: #{tpu_custom_call.1} parent=83 // pred_check
          %p1237 = pneg %p284
        $region94: #{tpu_custom_call.1} parent=83 // pred_check_branch
          %1239 = sbr.rel (%p1237) target = $region96
        $region95: #{tpu_custom_call.1} parent=83 // pred_region
          %s1240 = sand.u32 %s37, 1
          %s1241 = scalar_lea.sflag [#allocation15], %s1240
          %s1242 = sand.u32 %s269, 1
          %s1243 = smul.addr %s1242, 32
          %s1244 = scalar_lea.vmem [#allocation16], %s1243
          %1245 = dma.done %s1241, 512
        $region96: #{tpu_custom_call.1} parent=83 // pred_fallthru
          _
      $region84: #{tpu_custom_call.1} parent=5 // pred_fallthru
        _
    $region6: #{tpu_custom_call.1} parent=1 // loop_footer
      %s35 = sadd.s32 1, %s31
    $region7: #{tpu_custom_call.1} parent=1 // loop_footer_branch
      %30 = sbr.rel target = $region3
    $region8: #{tpu_custom_call.1} parent=1 // loop_exit
      _
    %1246 = vsyncpa [#allocation3], 1
    %s1247 = scalar_lea.sflag [#allocation3], 1
    %1248 = vsyncpa %s1247, 1
    %1249 = vsyncpa [#allocation6], 1
    %1250 = vsyncpa [#allocation9], 1
    %s1251 = scalar_lea.sflag [#allocation9], 1
    %1252 = vsyncpa %s1251, 1
    %1253 = vsyncpa [#allocation12], 1
    %s1254 = scalar_lea.sflag [#allocation12], 1
    %1255 = vsyncpa %s1254, 1
    %1256 = vsyncpa [#allocation4], 1
    %s1257 = scalar_lea.sflag [#allocation4], 1
    %1258 = vsyncpa %s1257, 1
    %1259 = vsyncpa [#allocation15], 1
    %s1260 = scalar_lea.sflag [#allocation15], 1
    %1261 = vsyncpa %s1260, 1

</llo_original>
